<compile_context>
chip_gen: v5e
topology: v5e:2x2
jax: 0.10.0
libtpu: 0.0.40
codegen_flags: <defaults>
</compile_context>

<pallas_src>
import functools

import jax
import jax.numpy as jnp
from jax.experimental import pallas as pl
from jax.experimental.pallas import tpu as pltpu


def _mae_kernel(ymin_ref, labels_ref, logits_ref, partial_ref, *,
                ignore_index, tile_pixels, total_pixels, needs_mask):
    j = pl.program_id(1)

    # Per-batch output block is the accumulator; init at the first pixel block.
    @pl.when(j == 0)
    def _():
        partial_ref[...] = jnp.zeros_like(partial_ref)

    x = logits_ref[0].astype(jnp.float32)                   # (C, tp) pixels on lanes
    lab = labels_ref[0].astype(jnp.int32)                   # (1, tp)
    # ignore_index remap: y[y == 255] = y.min()  (no-op when no 255 present)
    lab = jnp.where(lab == ignore_index, ymin_ref[0], lab)

    # p_true = softmax(x)[true] = 1 / sum_c exp(x_c - x_true); the exp(0)=1 term
    # bounds the denominator >= 1, and overflow of any row to +inf gives
    # p_true -> 0 (the correct limit).  Full prob matrix never materialized.
    cls = jax.lax.broadcasted_iota(jnp.int32, x.shape, 0)   # (C, tp)
    onehot = (cls == lab).astype(jnp.float32)               # scatter_(1, labels, 1)
    x_true = jnp.sum(x * onehot, axis=0, keepdims=True)     # (1, tp)
    denom = jnp.sum(jnp.exp(x - x_true), axis=0, keepdims=True)
    p_true = pl.reciprocal(denom, approx=True)              # (1, tp), recip on EUP

    if needs_mask:
        # Tail block: lanes past the real pixel count carry garbage (possibly
        # NaN/inf) — select, don't multiply, so they can't poison the sum.
        pix = j * tile_pixels + jax.lax.broadcasted_iota(jnp.int32, p_true.shape, 1)
        p_true = jnp.where(pix < total_pixels, p_true, 0.0)

    # Single lane reduce per block, accumulated into the tiny per-n output block.
    partial_ref[...] += jnp.sum(p_true).reshape(1, 1, 1)


def _padded_row_bytes(rows, dtype):
    """VMEM bytes of `rows` sublanes of `dtype` after sublane padding/packing."""
    itemsize = jnp.dtype(dtype).itemsize
    pack = {4: 8, 2: 16, 1: 32}.get(itemsize, 8)
    padded_rows = -(-rows // pack) * pack
    return padded_rows * itemsize


def _vmem_block_budget():
    """Double-buffered input-block budget: ~1/8 of VMEM (8 MiB v7x, 16 MiB v5e/v6e)."""
    try:
        cap = int(pltpu.get_tpu_info().vmem_capacity_bytes)
        return max(4 << 20, cap // 8)
    except Exception:
        return 8 << 20


def _pick_tile(pixels, C, logit_dtype, label_dtype, max_block_bytes=None):
    """Largest pixel tile whose *padded*, double-buffered footprint fits the budget."""
    if max_block_bytes is None:
        max_block_bytes = _vmem_block_budget()
    per_pixel = 2 * (_padded_row_bytes(C, logit_dtype) +
                     _padded_row_bytes(1, label_dtype))      # x2: double buffering
    tp_max = max(128, (max_block_bytes // per_pixel) // 128 * 128)
    if pixels <= tp_max:
        return pixels            # single block over the whole pixel row (full-dim ok)
    return tp_max                # multiple of 128; tail block handled by masking


def mae_loss(pred, y_true, scale=2.0, ignore_index=255, max_block_bytes=None):
    """pred: (N, C, H, W) float logits (f32 or bf16); y_true: (N, H, W) int labels.

    Matches MAELoss.forward with backlabel=None:
        scale * mean(1 - sum(one_hot(y) * softmax(pred, dim=1), dim=1))
    """
    N, C, H, W = pred.shape
    pixels = H * W

    # No transpose: NCHW reshaped to (N, C, H*W) already has pixels on the lane axis.
    logits = pred.reshape(N, C, pixels)
    # Labels kept in their native (possibly narrow) dtype; widened in-kernel.
    labels = y_true.reshape(N, 1, pixels)

    # Only global reduction needed in the wrapper; the 255-remap runs in-kernel.
    ymin = jnp.min(y_true).astype(jnp.int32).reshape(1)

    tp = _pick_tile(pixels, C, logits.dtype, labels.dtype, max_block_bytes)
    grid = (N, pl.cdiv(pixels, tp))
    needs_mask = (pixels % tp) != 0

    kernel = functools.partial(
        _mae_kernel,
        ignore_index=int(ignore_index),
        tile_pixels=int(tp),
        total_pixels=int(pixels),
        needs_mask=bool(needs_mask),
    )
    partials = pl.pallas_call(
        kernel,
        out_shape=jax.ShapeDtypeStruct((N, 1, 1), jnp.float32),
        grid_spec=pltpu.PrefetchScalarGridSpec(
            num_scalar_prefetch=1,
            grid=grid,
            in_specs=[
                pl.BlockSpec((1, 1, tp), lambda n, j, ymin: (n, 0, j)),   # labels
                pl.BlockSpec((1, C, tp), lambda n, j, ymin: (n, 0, j)),   # logits
            ],
            out_specs=pl.BlockSpec((1, 1, 1), lambda n, j, ymin: (n, 0, 0)),
        ),
        compiler_params=pltpu.CompilerParams(
            # batch axis shardable across TensorCores (v7x megacore); pixel axis
            # is the sequential reduction.
            dimension_semantics=("parallel", "arbitrary"),
            vmem_limit_bytes=32 * 1024 * 1024,
        ),
    )(ymin, labels, logits)

    inv_m = 1.0 / float(N * pixels)
    # loss = scale * mean(1 - p_true) = scale * (1 - sum(p_true) / M)
    return scale * (1.0 - jnp.sum(partials) * inv_m)


def _mae_loss_ref(pred, y_true, scale=2.0, ignore_index=255):
    """Pure-JAX reference mirroring the PyTorch module (backlabel=None)."""
    y = y_true.astype(jnp.int32)
    y = jnp.where(y == ignore_index, jnp.min(y), y)
    p = jax.nn.softmax(pred.astype(jnp.float32), axis=1)          # (N, C, H, W)
    onehot = jax.nn.one_hot(y, pred.shape[1], axis=1, dtype=jnp.float32)
    p_true = jnp.sum(onehot * p, axis=1)                          # (N, H, W)
    return scale * jnp.mean(1.0 - p_true)


if __name__ == "__main__":
    key = jax.random.PRNGKey(0)
    k1, k2 = jax.random.split(key)

    # H*W = 240 is NOT a multiple of 128 -> exercises the pad+mask tail path.
    N, C, H, W = 2, 4, 16, 15
    pred = jax.random.normal(k1, (N, C, H, W), dtype=jnp.float32)
    y_true = jax.random.randint(k2, (N, H, W), 0, C, dtype=jnp.int32)
    # sprinkle a few ignore_index pixels to exercise the 255 -> min remap
    y_true = y_true.at[0, 0, 0].set(255).at[1, 5, 7].set(255)

    # Tiny block budget forces tp=128: multi-step pixel grid, output-resident
    # accumulation across steps, and a masked partial tail block.
    loss = mae_loss(pred, y_true, scale=2.0, ignore_index=255,
                    max_block_bytes=2048)
    jax.block_until_ready(loss)

    ref = _mae_loss_ref(pred, y_true, scale=2.0, ignore_index=255)
    assert abs(float(loss) - float(ref)) < 1e-2, (float(loss), float(ref))

    print("KERNEL_OK")
</pallas_src>

<mosaic_0001>
module attributes {stable_mosaic.version = 11 : i64} {
  func.func @_mae_kernel(%arg0: i32, %arg1: i32, %arg2: memref<1xi32, #tpu.memory_space<smem>>, %arg3: memref<1x1x128xi32, #tpu.memory_space<vmem>>, %arg4: memref<1x4x128xf32, #tpu.memory_space<vmem>>, %arg5: memref<1x1x1xf32, #tpu.memory_space<vmem>>) attributes {dimension_semantics = [#tpu.dimension_semantics<parallel>, #tpu.dimension_semantics<arbitrary>], iteration_bounds = array<i64: 2, 2>, scalar_prefetch = 1 : i64, scratch_operands = 0 : i64, tpu.core_type = #tpu.core_type<tc>, window_params = [{transform_indices = @transform_0, window_bounds = array<i64: 1, 1, 128>}, {transform_indices = @transform_1, window_bounds = array<i64: 1, 4, 128>}, {transform_indices = @transform_2, window_bounds = array<i64: 1, 1, 1>}]} {
    %c0_i32 = arith.constant 0 : i32
    %0 = arith.cmpi eq, %arg1, %c0_i32 : i32
    %1 = arith.extui %0 : i1 to i32
    %c0_i32_0 = arith.constant 0 : i32
    %2 = arith.cmpi ne, %1, %c0_i32_0 : i32
    scf.if %2 {
      %cst_16 = arith.constant 0.000000e+00 : f32
      %42 = vector.broadcast %cst_16 : f32 to vector<1x1x1xf32>
      %c0_17 = arith.constant 0 : index
      %c0_18 = arith.constant 0 : index
      %c0_19 = arith.constant 0 : index
      %43 = vector.load %arg5[%c0_17, %c0_18, %c0_19] : memref<1x1x1xf32, #tpu.memory_space<vmem>>, vector<1x1x1xf32>
      tpu.vector_store %arg5[%c0_17, %c0_18, %c0_19], %42 {strides = array<i32>} : memref<1x1x1xf32, #tpu.memory_space<vmem>>, vector<1x1x1xf32>,
    } else {
    }
    %c0 = arith.constant 0 : index
    %c0_1 = arith.constant 0 : index
    %c0_2 = arith.constant 0 : index
    %3 = vector.load %arg4[%c0, %c0_1, %c0_2] : memref<1x4x128xf32, #tpu.memory_space<vmem>>, vector<1x4x128xf32>
    %4 = vector.shape_cast %3 : vector<1x4x128xf32> to vector<4x128xf32>
    %c0_3 = arith.constant 0 : index
    %c0_4 = arith.constant 0 : index
    %c0_5 = arith.constant 0 : index
    %5 = vector.load %arg3[%c0_3, %c0_4, %c0_5] : memref<1x1x128xi32, #tpu.memory_space<vmem>>, vector<1x1x128xi32>
    %6 = vector.shape_cast %5 : vector<1x1x128xi32> to vector<1x128xi32>
    %c255_i32 = arith.constant 255 : i32
    %7 = vector.broadcast %c255_i32 : i32 to vector<1x128xi32>
    %8 = arith.cmpi eq, %6, %7 : vector<1x128xi32>
    %c0_6 = arith.constant 0 : index
    %9 = memref.load %arg2[%c0_6] : memref<1xi32, #tpu.memory_space<smem>>
    %10 = vector.broadcast %9 : i32 to vector<1x128xi32>
    %11 = arith.select %8, %10, %6 : vector<1x128xi1>, vector<1x128xi32>
    %12 = tpu.iota {dimensions = array<i32: 0>} : vector<4x128xi32>
    %13 = vector.broadcast %11 : vector<1x128xi32> to vector<4x128xi32>
    %14 = arith.cmpi eq, %12, %13 : vector<4x128xi32>
    %15 = arith.extui %14 : vector<4x128xi1> to vector<4x128xi32>
    %16 = arith.sitofp %15 : vector<4x128xi32> to vector<4x128xf32>
    %17 = arith.mulf %4, %16 : vector<4x128xf32>
    %cst = arith.constant dense<0.000000e+00> : vector<128xf32>
    %18 = vector.multi_reduction <add>, %17, %cst [0] : vector<4x128xf32> to vector<128xf32>
    %19 = vector.shape_cast %18 : vector<128xf32> to vector<1x128xf32>
    %20 = vector.broadcast %19 : vector<1x128xf32> to vector<4x128xf32>
    %21 = arith.subf %4, %20 : vector<4x128xf32>
    %22 = math.exp %21 : vector<4x128xf32>
    %cst_7 = arith.constant dense<0.000000e+00> : vector<128xf32>
    %23 = vector.multi_reduction <add>, %22, %cst_7 [0] : vector<4x128xf32> to vector<128xf32>
    %24 = vector.shape_cast %23 : vector<128xf32> to vector<1x128xf32>
    %25 = tpu.reciprocal %24 {approx = true} : vector<1x128xf32> -> vector<1x128xf32>
    %c128_i32 = arith.constant 128 : i32
    %26 = arith.muli %arg1, %c128_i32 : i32
    %27 = tpu.iota {dimensions = array<i32: 1>} : vector<1x128xi32>
    %28 = vector.broadcast %26 : i32 to vector<1x128xi32>
    %29 = arith.addi %28, %27 : vector<1x128xi32>
    %c240_i32 = arith.constant 240 : i32
    %30 = vector.broadcast %c240_i32 : i32 to vector<1x128xi32>
    %31 = arith.cmpi slt, %29, %30 : vector<1x128xi32>
    %cst_8 = arith.constant 0.000000e+00 : f32
    %32 = vector.broadcast %cst_8 : f32 to vector<1x128xf32>
    %33 = arith.select %31, %25, %32 : vector<1x128xi1>, vector<1x128xf32>
    %c0_9 = arith.constant 0 : index
    %c0_10 = arith.constant 0 : index
    %c0_11 = arith.constant 0 : index
    %34 = vector.load %arg5[%c0_9, %c0_10, %c0_11] : memref<1x1x1xf32, #tpu.memory_space<vmem>>, vector<1x1x1xf32>
    %35 = vector.shape_cast %33 : vector<1x128xf32> to vector<1x1x128xf32>
    %cst_12 = arith.constant dense<0.000000e+00> : vector<1xf32>
    %36 = vector.multi_reduction <add>, %35, %cst_12 [1, 2] : vector<1x1x128xf32> to vector<1xf32>
    %37 = vector.shape_cast %36 : vector<1xf32> to vector<1x1x1xf32>
    %38 = vector.extract %37[0, 0, 0] : f32 from vector<1x1x1xf32>
    %39 = vector.broadcast %38 : f32 to vector<1x1x1xf32>
    %40 = arith.addf %34, %39 : vector<1x1x1xf32>
    %c0_13 = arith.constant 0 : index
    %c0_14 = arith.constant 0 : index
    %c0_15 = arith.constant 0 : index
    %41 = vector.load %arg5[%c0_13, %c0_14, %c0_15] : memref<1x1x1xf32, #tpu.memory_space<vmem>>, vector<1x1x1xf32>
    tpu.vector_store %arg5[%c0_13, %c0_14, %c0_15], %40 {strides = array<i32>} : memref<1x1x1xf32, #tpu.memory_space<vmem>>, vector<1x1x1xf32>,
    return
  }
  func.func @transform_0(%arg0: i32, %arg1: i32, %arg2: memref<1xi32, #tpu.memory_space<smem>>) -> (i32, i32, i32) {
    %c0_i32 = arith.constant 0 : i32
    %c0_i32_0 = arith.constant 0 : i32
    return %arg0, %c0_i32, %arg1 : i32, i32, i32
  }
  func.func @transform_1(%arg0: i32, %arg1: i32, %arg2: memref<1xi32, #tpu.memory_space<smem>>) -> (i32, i32, i32) {
    %c0_i32 = arith.constant 0 : i32
    %c0_i32_0 = arith.constant 0 : i32
    return %arg0, %c0_i32, %arg1 : i32, i32, i32
  }
  func.func @transform_2(%arg0: i32, %arg1: i32, %arg2: memref<1xi32, #tpu.memory_space<smem>>) -> (i32, i32, i32) {
    %c0_i32 = arith.constant 0 : i32
    %c0_i32_0 = arith.constant 0 : i32
    %c0_i32_1 = arith.constant 0 : i32
    return %arg0, %c0_i32, %c0_i32_0 : i32, i32, i32
  }
}

</mosaic_0001>

<llo_original>
// kernel: tpu_custom_call.1
$region0: #{tpu_custom_call.1}
  #allocation0 [shape = 'u32[]', space=smem, size = 0x4, offset = 0x4, fixed_abs, tag = 'smem constant byte address 0x4 - core index']
  #allocation1 [shape = 'u32[72,128]{1,0:T(1,128)}', space=vmem, size = 0x9000, scoped, tag = 'internal scratch']
  #allocation2 [shape = 's32[1]{0}', space=sflag, size = 0x4, scoped, tag = 'scoped memory for tpu_custom_call.1']
  #allocation3 [shape = 's32[1]{0:T(128)S(6)}', space=smem, size = 0x200, scoped, tag = 'prefetched SMEM operand 0']
  %s0 = inlined_call_operand.<no memory space> [shape: s32[1], index: 0, kind: input, shape index: {}]
  %s1 = inlined_call_operand.hbm [shape: s32[2,1,240], index: 1, kind: input, shape index: {}]
  %s2 = inlined_call_operand.hbm [shape: f32[2,4,240], index: 2, kind: input, shape index: {}]
  %s3 = inlined_call_operand.vmem [shape: f32[2,1,1], index: 3, kind: output, shape index: {}]
  %s4 = sld [smem:[#allocation0]]
  $region53: #{tpu_custom_call.1} parent=0
    _
  %s6 = ssub.s32 1, %s4
  %s7 = scalar_select 0, %s6, %s4
  %8 = sst [smem:[#allocation3]] %s0
  $region1: #{tpu_custom_call.1} parent=0
    #allocation4 [shape = 'u8[1024]{0}', space=vmem, size = 0x400, scoped, tag = 'input window, operand 1']
    #allocation5 [shape = 's32[2]{0}', space=sflag, size = 0x8, scoped, tag = 'scoped memory for tpu_custom_call.1']
    #allocation6 [shape = 'u8[4096]{0}', space=vmem, size = 0x1000, scoped, tag = 'input window, operand 2']
    #allocation7 [shape = 's32[2]{0}', space=sflag, size = 0x8, scoped, tag = 'scoped memory for tpu_custom_call.1']
    %9 = vsyncpa [#allocation5], 0
    %s10 = scalar_lea.sflag [#allocation5], 1
    %11 = vsyncpa %s10, 0
    %12 = vsyncpa [#allocation7], 0
    %s13 = scalar_lea.sflag [#allocation7], 1
    %14 = vsyncpa %s13, 0
    loop: start=0, step=1, limit=6
    $region2: #{tpu_custom_call.1} parent=1 // loop_pre_header
      _
    $region3: #{tpu_custom_call.1} parent=1 // loop_header
      %s16 = sphi 0, %s20
      %p17 = scmp.ge.s32.totalorder %s16, 6
      %s23 = sphi 0, %s35
      %s24 = sphi 0, %s31
      %s25 = sphi 0, %s23
      %s26 = sphi 0, %s24
      %s27 = sphi 0, %s25
      %s28 = sphi 0, %s26
      %s40 = sphi 0, %s42
      %s43 = sphi 0, %s40
      %s44 = sphi 0, %s43
      %s60 = sphi 0, %s44
      %s68 = sphi 0, %s70
      %s71 = sphi 0, %s68
      %s72 = sphi 0, %s71
      %s88 = sphi 0, %s72
      %s94 = sphi 0, %s96
      %s97 = sphi 0, %s94
      %s98 = sphi 0, %s97
      %s114 = sphi 0, %s98
    $region4: #{tpu_custom_call.1} parent=1 // loop_header_branch
      %19 = sbr.rel (%p17) target = $region8
    $region5: #{tpu_custom_call.1} parent=1 // loop_body
      %s21 = ssub.s32 %s16, 1
      %s22 = ssub.s32 %s16, 2
      %s29 = sadd.s32 1, %s24
      %p30 = scmp.ge.s32.totalorder %s29, 2
      %s31 = scalar_select %p30, 0, %s29
      %s32 = sadd.s32 1, %s23
      %s33 = scalar_select %p30, %s32, %s23
      %p34 = scmp.ge.s32.totalorder %s33, 2
      %s35 = scalar_select %p34, 0, %s33
      %s36 = ssub.s32 %s23, %s35
      %s37 = ssub.s32 %s24, %s31
      %s38 = sor.u32 %s36, %s37
      %p39 = scmp.eq.s32.totalorder %s38, 0
      %s41 = sadd.s32 %s40, 1
      %s42 = scalar_select %p39, %s40, %s41
      %p45 = pneg %p39
      %p46 = scmp.eq.s32.totalorder %s16, 3
      %p47 = por %p45, %p46
      %p48 = scmp.ne.s32.totalorder %s40, %s43
      %p49 = scmp.eq.s32.totalorder %s16, 0
      %p50 = por %p48, %p49
      %p51 = scmp.ne.s32.totalorder %s40, %s43
      %p52 = scmp.eq.s32.totalorder %s21, 3
      %p53 = por %p51, %p52
      %p54 = scmp.ne.s32.totalorder %s43, %s44
      %p55 = scmp.eq.s32.totalorder %s21, 0
      %p56 = por %p54, %p55
      %p57 = scmp.ne.s32.totalorder %s43, %s44
      %p58 = scmp.eq.s32.totalorder %s22, 3
      %p59 = por %p57, %p58
      %p61 = scmp.ne.s32.totalorder %s44, %s60
      %p62 = scmp.eq.s32.totalorder %s22, 0
      %p63 = por %p61, %p62
      %s64 = ssub.s32 %s23, %s35
      %s65 = ssub.s32 %s24, %s31
      %s66 = sor.u32 %s64, %s65
      %p67 = scmp.eq.s32.totalorder %s66, 0
      %s69 = sadd.s32 %s68, 1
      %s70 = scalar_select %p67, %s68, %s69
      %p73 = pneg %p67
      %p74 = scmp.eq.s32.totalorder %s16, 3
      %p75 = por %p73, %p74
      %p76 = scmp.ne.s32.totalorder %s68, %s71
      %p77 = scmp.eq.s32.totalorder %s16, 0
      %p78 = por %p76, %p77
      %p79 = scmp.ne.s32.totalorder %s68, %s71
      %p80 = scmp.eq.s32.totalorder %s21, 3
      %p81 = por %p79, %p80
      %p82 = scmp.ne.s32.totalorder %s71, %s72
      %p83 = scmp.eq.s32.totalorder %s21, 0
      %p84 = por %p82, %p83
      %p85 = scmp.ne.s32.totalorder %s71, %s72
      %p86 = scmp.eq.s32.totalorder %s22, 3
      %p87 = por %p85, %p86
      %p89 = scmp.ne.s32.totalorder %s72, %s88
      %p90 = scmp.eq.s32.totalorder %s22, 0
      %p91 = por %p89, %p90
      %s92 = ssub.s32 %s23, %s35
      %p93 = scmp.eq.s32.totalorder %s92, 0
      %s95 = sadd.s32 %s94, 1
      %s96 = scalar_select %p93, %s94, %s95
      %p99 = pneg %p93
      %p100 = scmp.eq.s32.totalorder %s16, 3
      %p101 = por %p99, %p100
      %p102 = scmp.ne.s32.totalorder %s94, %s97
      %p103 = scmp.eq.s32.totalorder %s16, 0
      %p104 = por %p102, %p103
      %p105 = scmp.ne.s32.totalorder %s94, %s97
      %p106 = scmp.eq.s32.totalorder %s21, 3
      %p107 = por %p105, %p106
      %p108 = scmp.ne.s32.totalorder %s97, %s98
      %p109 = scmp.eq.s32.totalorder %s21, 0
      %p110 = por %p108, %p109
      %p111 = scmp.ne.s32.totalorder %s97, %s98
      %p112 = scmp.eq.s32.totalorder %s22, 3
      %p113 = por %p111, %p112
      %p115 = scmp.ne.s32.totalorder %s98, %s114
      %p116 = scmp.eq.s32.totalorder %s22, 0
      %p117 = por %p115, %p116
      %p118 = scmp.le.s32.totalorder 1, %s16
      %p119 = scmp.lt.s32.totalorder %s16, 5
      %p120 = pnand %p118, %p119
      %p121 = pneg %p120
      // Predicated region
      $region9: #{tpu_custom_call.1} parent=5 // pred_check
        _
      $region10: #{tpu_custom_call.1} parent=5 // pred_check_branch
        %123 = sbr.rel (%p120) target = $region12
      $region11: #{tpu_custom_call.1} parent=5 // pred_region
        %s124 = ssub.s32 %s16, 1
      $region12: #{tpu_custom_call.1} parent=5 // pred_fallthru
        _
      %p125 = scmp.lt.s32.totalorder %s16, 4
      // Predicated region
      $region13: #{tpu_custom_call.1} parent=5 // pred_check
        %p126 = pneg %p125
      $region14: #{tpu_custom_call.1} parent=5 // pred_check_branch
        %128 = sbr.rel (%p126) target = $region16
      $region15: #{tpu_custom_call.1} parent=5 // pred_region
        // Predicated region
        $region17: #{tpu_custom_call.1} parent=15 // pred_check
          %p129 = pneg %p50
        $region18: #{tpu_custom_call.1} parent=15 // pred_check_branch
          %131 = sbr.rel (%p129) target = $region20
        $region19: #{tpu_custom_call.1} parent=15 // pred_region
          %s132 = sand.u32 %s40, 1
          %s133 = scalar_lea.sflag [#allocation5], %s132
          %s134 = sand.u32 %s40, 1
          %s135 = scalar_lea.vmem [#allocation4], %s134
          %137 = vsyncadd %s133, 0
          %s138 = smul.addr %s23, 2
          %s139 = sadd.s32 %s24, %s138
          %s140 = scalar_lea.hbm %s1, %s139
          %s142 = sshll.u32 %s140, 4
          %s143 = int_to_ptr.hbm [resolvable:$true] %s142
          %s144 = sshll.u32 %s135, 4
          %s145 = int_to_ptr.vmem [resolvable:$true] %s144
          %147 = dma.hbm_to_vmem [thread:$0]  %s143, 16, %s145, %s133
        $region20: #{tpu_custom_call.1} parent=15 // pred_fallthru
          _
        // Predicated region
        $region21: #{tpu_custom_call.1} parent=15 // pred_check
          %p148 = pneg %p78
        $region22: #{tpu_custom_call.1} parent=15 // pred_check_branch
          %150 = sbr.rel (%p148) target = $region24
        $region23: #{tpu_custom_call.1} parent=15 // pred_region
          %s151 = sand.u32 %s68, 1
          %s152 = scalar_lea.sflag [#allocation7], %s151
          %s153 = sand.u32 %s68, 1
          %s154 = smul.addr %s153, 4
          %s155 = scalar_lea.vmem [#allocation6], %s154
          %157 = vsyncadd %s152, 0
          %s158 = smul.addr %s23, 2
          %s159 = sadd.s32 %s24, %s158
          %s160 = smul.addr %s159, 4
          %s161 = scalar_lea.hbm %s2, %s160
          %s163 = sshll.u32 %s161, 4
          %s164 = int_to_ptr.hbm [resolvable:$true] %s163
          %s165 = sshll.u32 %s155, 4
          %s166 = int_to_ptr.vmem [resolvable:$true] %s165
          %168 = dma.hbm_to_vmem [thread:$0]  %s164, 64, %s166, %s152
        $region24: #{tpu_custom_call.1} parent=15 // pred_fallthru
          _
      $region16: #{tpu_custom_call.1} parent=5 // pred_fallthru
        _
      %p169 = scmp.le.s32.totalorder 1, %s16
      %p170 = scmp.lt.s32.totalorder %s16, 5
      %p171 = pnand %p169, %p170
      %p172 = pneg %p171
      // Predicated region
      $region25: #{tpu_custom_call.1} parent=5 // pred_check
        _
      $region26: #{tpu_custom_call.1} parent=5 // pred_check_branch
        %174 = sbr.rel (%p171) target = $region28
      $region27: #{tpu_custom_call.1} parent=5 // pred_region
        %s175 = ssub.s32 %s16, 1
        %s176 = sand.u32 %s43, 1
        %s177 = scalar_lea.sflag [#allocation5], %s176
        %s178 = sand.u32 %s43, 1
        %s179 = scalar_lea.vmem [#allocation4], %s178
        // Predicated region
        $region29: #{tpu_custom_call.1} parent=27 // pred_check
          %p180 = pneg %p56
        $region30: #{tpu_custom_call.1} parent=27 // pred_check_branch
          %182 = sbr.rel (%p180) target = $region32
        $region31: #{tpu_custom_call.1} parent=27 // pred_region
          %184 = dma.done %s177, 16
        $region32: #{tpu_custom_call.1} parent=27 // pred_fallthru
          _
        %s185 = sand.u32 %s71, 1
        %s186 = scalar_lea.sflag [#allocation7], %s185
        %s187 = sand.u32 %s71, 1
        %s188 = smul.addr %s187, 4
        %s189 = scalar_lea.vmem [#allocation6], %s188
        // Predicated region
        $region33: #{tpu_custom_call.1} parent=27 // pred_check
          %p190 = pneg %p84
        $region34: #{tpu_custom_call.1} parent=27 // pred_check_branch
          %192 = sbr.rel (%p190) target = $region36
        $region35: #{tpu_custom_call.1} parent=27 // pred_region
          %194 = dma.done %s186, 64
        $region36: #{tpu_custom_call.1} parent=27 // pred_fallthru
          _
        %s195 = sand.u32 %s43, 1
        %s196 = scalar_lea.sflag [#allocation5], %s195
        %s197 = sand.u32 %s43, 1
        %s198 = scalar_lea.vmem [#allocation4], %s197
        %p199 = pneg %p56
        %p200 = pneg %p53
        %s201 = sand.u32 %s71, 1
        %s202 = scalar_lea.sflag [#allocation7], %s201
        %s203 = sand.u32 %s71, 1
        %s204 = smul.addr %s203, 4
        %s205 = scalar_lea.vmem [#allocation6], %s204
        %p206 = pneg %p84
        %p207 = pneg %p81
        %p208 = pneg %p110
        %p209 = pneg %p107
        %p210 = scmp.lt.s32.totalorder %s25, 1
        %s211 = scalar_select %p210, %s25, 1
        %s212 = scalar_lea.vmem %s3, %s211
        %p213 = scmp.lt.s32.totalorder %s25, 1
        %s214 = scalar_select %p213, %s25, 1
        %s215 = scalar_lea.vmem %s3, %s214
        %p216 = scmp.eq.s32.totalorder %s26, 0
        // Predicated region
        $region37: #{tpu_custom_call.1} parent=27 // pred_check
          %p217 = pneg %p216
        $region38: #{tpu_custom_call.1} parent=27 // pred_check_branch
          %219 = sbr.rel (%p217) target = $region40
        $region39: #{tpu_custom_call.1} parent=27 // pred_region
          %vm220 = vcmask 0
          %221 = vst.msk [vmem:[%s215] sm:$0x1] %vm220, 0.0
        $region40: #{tpu_custom_call.1} parent=27 // pred_fallthru
          _
        %v222 = vld [vmem:[%s189] sm:$0xf]
        %v223 = vld [vmem:[%s179] sm:$0x1]
        %vm224 = vcmp.eq.s32.totalorder %v223, 255
        %s225 = sld [smem:[#allocation3]]
        %v226 = vstv %s225
        %v227 = vsel %vm224, %v226, %v223
        %v228 = vlaneseq
        %v229 = vshrl.u32 %v228, 7
        %v230 = vperm.slane %v227, 0
        %vm231 = vcmp.eq.s32.totalorder %v229, %v230
        %v232 = vsel %vm231, 1, 0
        %v233 = vcvt.s32.f32 %v232
        %v234 = vmul.f32 %v222, %v233
        %vm235 = vcmask 1043456
        %v236 = vsel %vm235, %v234, 0.0
        %v237 = vrot.slane %v236, 4
        %v238 = vadd.f32 %v236, %v237
        %v239 = vrot.slane %v238, 2
        %v240 = vadd.f32 %v238, %v239
        %v241 = vrot.slane %v240, 1
        %v242 = vadd.f32 %v240, %v241
        %v243 = vsub.f32 %v222, %v242
        %v244 = vmul.f32 %v243, 1.442695
        %v245 = vpow.pop %v244
        %v246 = vsel %vm235, %v245, 0.0
        %v247 = vrot.slane %v246, 4
        %v248 = vadd.f32 %v246, %v247
        %v249 = vrot.slane %v248, 2
        %v250 = vadd.f32 %v248, %v249
        %v251 = vrot.slane %v250, 1
        %v252 = vadd.f32 %v250, %v251
        %v253 = vrcp.pop %v252
        %s254 = smul.u32 %s26, 128
        %v255 = vlaneseq
        %v256 = vand.u32 %v255, 127
        %v257 = vstv %s254
        %v258 = vadd.s32 %v257, %v256
        %vm259 = vcmp.lt.s32.totalorder %v258, 240
        %v260 = vsel %vm259, %v253, 0.0
        %v261 = vld [vmem:[%s215] sm:$0x1]
        %vm262 = vcmask 1040384
        %v263 = vsel %vm262, %v260, 0.0
        %264 = vadd.xlane.f32.xlu0 %v263
        %v265 = vpop.xlane.xlu0 %264
        %v266 = vrot.slane %v265, 4
        %v267 = vadd.f32 %v265, %v266
        %v268 = vrot.slane %v267, 2
        %v269 = vadd.f32 %v267, %v268
        %v270 = vrot.slane %v269, 1
        %v271 = vadd.f32 %v269, %v270
        %s272 = vtos %v271
        %v273 = vstv %s272
        %v274 = vadd.f32 %v261, %v273
        %vm275 = vcmask 0
        %276 = vst.msk [vmem:[%s215] sm:$0x1] %vm275, %v274
        %p277 = scmp.lt.s32.totalorder %s25, 1
        %s278 = scalar_select %p277, %s25, 1
        %s279 = scalar_lea.vmem %s3, %s278
        // Predicated region
        $region41: #{tpu_custom_call.1} parent=27 // pred_check
          %p280 = pneg %p107
        $region42: #{tpu_custom_call.1} parent=27 // pred_check_branch
          %282 = sbr.rel (%p280) target = $region44
        $region43: #{tpu_custom_call.1} parent=27 // pred_region
          _
        $region44: #{tpu_custom_call.1} parent=27 // pred_fallthru
          _
      $region28: #{tpu_custom_call.1} parent=5 // pred_fallthru
        _
      %p283 = scmp.le.s32.totalorder 2, %s16
      // Predicated region
      $region45: #{tpu_custom_call.1} parent=5 // pred_check
        %p284 = pneg %p283
      $region46: #{tpu_custom_call.1} parent=5 // pred_check_branch
        %286 = sbr.rel (%p284) target = $region48
      $region47: #{tpu_custom_call.1} parent=5 // pred_region
        %s287 = ssub.s32 %s16, 2
        // Predicated region
        $region49: #{tpu_custom_call.1} parent=47 // pred_check
          %p288 = pneg %p113
        $region50: #{tpu_custom_call.1} parent=47 // pred_check_branch
          %290 = sbr.rel (%p288) target = $region52
        $region51: #{tpu_custom_call.1} parent=47 // pred_region
          %p291 = scmp.lt.s32.totalorder %s27, 1
          %s292 = scalar_select %p291, %s27, 1
          %s293 = scalar_lea.vmem %s3, %s292
        $region52: #{tpu_custom_call.1} parent=47 // pred_fallthru
          _
      $region48: #{tpu_custom_call.1} parent=5 // pred_fallthru
        _
    $region6: #{tpu_custom_call.1} parent=1 // loop_footer
      %s20 = sadd.s32 1, %s16
    $region7: #{tpu_custom_call.1} parent=1 // loop_footer_branch
      %15 = sbr.rel target = $region3
    $region8: #{tpu_custom_call.1} parent=1 // loop_exit
      _
    %294 = vsyncpa [#allocation5], 1
    %s295 = scalar_lea.sflag [#allocation5], 1
    %296 = vsyncpa %s295, 1
    %297 = vsyncpa [#allocation7], 1
    %s298 = scalar_lea.sflag [#allocation7], 1
    %299 = vsyncpa %s298, 1

</llo_original>
